<compile_context>
chip_gen: v7x
topology: tpu7x:2x2x1
jax: 0.10.0
libtpu: 0.0.40
codegen_flags: <defaults>
</compile_context>

<pallas_src>
import functools
import math

import jax
import jax.numpy as jnp
from jax import lax
from jax.experimental import pallas as pl
from jax.experimental.pallas import tpu as pltpu


def _round_up(x, m):
    return (x + m - 1) // m * m


def _pick_kv_block(T, max_kv=512):
    if T <= max_kv:
        return T
    # prefer lane-friendly multiples of 128, then multiples of 8
    for c in range(max_kv - max_kv % 128, 127, -128):
        if T % c == 0:
            return c
    for c in range(max_kv - max_kv % 8, 7, -8):
        if T % c == 0:
            return c
    raise ValueError(
        f"num_tokens={T} has no key-tile divisor that is a multiple of 8 and "
        f"<= {max_kv}; pad the sequence length or pass kv_block explicitly.")


def _causal_attn_kernel(x_ref, w_ref, b_ref, o_ref, q_scr, acc_scr, *,
                        kv_tile, d_pad, inv_scale, mxu_dtype, exp_dtype):
    """Grid = (batch, key-tile), key axis iterated in REVERSE order.

    x_ref  : (1, kv_tile, d_in)  x tile (feeds this tile's Q *and* K/V), mxu dtype
    w_ref  : (d_in, 3*d_pad)     [Wq | Wk | Wv], pre-transposed, zero-padded, mxu dtype
    b_ref  : (1, 3*d_pad)        [bq | bk | bv], f32
    o_ref  : (1, T, d_pad)       output block (resident across the kv axis)
    q_scr  : (T, d_pad)          pre-scaled Q rows, filled incrementally, mxu dtype
    acc_scr: (T, d_pad)          f32 output accumulator
    """
    kk = pl.program_id(1)
    nk = pl.num_programs(1)
    t = nk - 1 - kk                       # key/query tile processed this step
    T = q_scr.shape[0]

    # ---- once per batch element: reset accumulator (and q_scr if multi-tile).
    @pl.when(kk == 0)
    def _init():
        if T != kv_tile:                  # not-yet-written Q rows feed the matmul;
            q_scr[...] = jnp.zeros_like(q_scr)   # keep them 0 (they get masked)
        acc_scr[...] = jnp.zeros_like(acc_scr)

    # ---- fused Q/K/V projection of this tile: one wide MXU matmul.
    xt = x_ref[0]                                                     # (kv, d_in)
    qkv = jnp.dot(xt, w_ref[...], preferred_element_type=jnp.float32) + b_ref[0]
    q = qkv[:, 0:d_pad]
    k = qkv[:, d_pad:2 * d_pad]
    v = qkv[:, 2 * d_pad:3 * d_pad]

    # Store this tile's pre-scaled Q.  Reverse kv order guarantees every Q row the
    # causal mask keeps for key tile t (rows >= t*kv_tile) has already been written.
    q_tile = (q * inv_scale).astype(q_scr.dtype)
    if T == kv_tile:
        q_scr[...] = q_tile                                  # static full store
    else:
        start = pl.multiple_of(t * kv_tile, kv_tile)
        q_scr[pl.ds(start, kv_tile), :] = q_tile

    # ---- scores (T, kv_tile): contraction over d_pad (RHS given untransposed).
    s = lax.dot_general(q_scr[...], k.astype(mxu_dtype),
                        (((1,), (1,)), ((), ())),
                        preferred_element_type=jnp.float32)

    # Causal mask: global key index j > query index i -> -inf.  This also kills
    # the not-yet-valid (zero) query rows, since i < t*kv_tile <= j there.
    row = lax.broadcasted_iota(jnp.int32, (T, kv_tile), 0)            # query i
    col = lax.broadcasted_iota(jnp.int32, (T, kv_tile), 1) + t * kv_tile
    s = jnp.where(col > row, -jnp.inf, s)

    # Softmax over the QUERY axis (torch.softmax(..., dim=1)).  Column-local, so
    # accumulating P@V across key tiles needs no rescaling.  exp in bf16 (EUP
    # bf16 path on v6e/v7x); normalization folded into V (kv*d vs T*kv mults).
    m = jnp.max(s, axis=0, keepdims=True)                             # (1, kv)
    p = jnp.exp((s - m).astype(exp_dtype))                            # (T, kv)
    denom = jnp.sum(p.astype(jnp.float32), axis=0, keepdims=True)     # (1, kv) f32
    r_col = pl.reciprocal(denom, approx=True).reshape(kv_tile, 1)     # (kv, 1)
    v_scaled = (v * r_col).astype(mxu_dtype)                          # (kv, d_pad)
    # TODO(synk): dropout on the attention weights skipped (identity / eval mode).

    acc_scr[...] += jnp.dot(p.astype(mxu_dtype), v_scaled,
                            preferred_element_type=jnp.float32)

    @pl.when(kk == nk - 1)
    def _finalize():
        o_ref[0] = acc_scr[...].astype(o_ref.dtype)


def causal_attention(x, params, *, kv_block=None, mxu_dtype=jnp.bfloat16,
                     exp_dtype=jnp.bfloat16):
    B, T, d_in = x.shape
    d_out = params["wq"].shape[0]
    d_pad = max(128, _round_up(d_out, 128))    # lane-dense scratch / output / MXU

    # Literal PyTorch: atten_score / keys.shape[-1] ** 0.5  (== real d_out).
    inv_scale = 1.0 / math.sqrt(d_out)

    if kv_block is None:
        kv_block = _pick_kv_block(T)
    if T % kv_block != 0:
        raise ValueError(f"T={T} must be divisible by kv_block={kv_block}")
    num_kv = T // kv_block

    # nn.Linear stores weight (out, in); pre-transpose, zero-pad to d_pad and fuse
    # [Wq|Wk|Wv] so each tile's projection is a single wide MXU matmul.  Padded
    # columns are exactly zero -> scores and outputs are unchanged.
    def prep_w(w):
        return jnp.pad(w.T.astype(mxu_dtype), ((0, 0), (0, d_pad - d_out)))

    def prep_b(b):
        return jnp.pad(b.astype(jnp.float32), (0, d_pad - d_out))

    w_qkv = jnp.concatenate(
        [prep_w(params["wq"]), prep_w(params["wk"]), prep_w(params["wv"])], axis=1)
    b_qkv = jnp.concatenate(
        [prep_b(params["bq"]), prep_b(params["bk"]), prep_b(params["bv"])]
    ).reshape(1, 3 * d_pad)

    x_c = x.astype(mxu_dtype)

    kernel = functools.partial(_causal_attn_kernel, kv_tile=kv_block, d_pad=d_pad,
                               inv_scale=inv_scale, mxu_dtype=mxu_dtype,
                               exp_dtype=exp_dtype)

    # Per-shape VMEM budget (instead of a hard-coded cap): double-buffered x tile,
    # weights, biases, output block + resident scratch, plus headroom for Mosaic
    # internal scratch.  Clamped so small shapes stay at the portable default.
    itm = jnp.dtype(mxu_dtype).itemsize
    footprint = (2 * kv_block * d_in * itm            # x tile (double-buffered)
                 + 2 * d_in * 3 * d_pad * itm         # fused weight
                 + 2 * 3 * d_pad * 4                  # fused bias
                 + 2 * T * d_pad * x.dtype.itemsize   # output block
                 + T * d_pad * itm                    # q_scr
                 + T * d_pad * 4)                     # acc_scr
    vmem_limit = int(min(100 * 2**20, max(32 * 2**20, 2 * footprint + (8 << 20))))

    out = pl.pallas_call(
        kernel,
        out_shape=jax.ShapeDtypeStruct((B, T, d_pad), x.dtype),
        grid_spec=pltpu.PrefetchScalarGridSpec(
            num_scalar_prefetch=0,
            grid=(B, num_kv),                         # reduction (kv) axis last
            in_specs=[
                # single x tile feeds Q (this tile) and K/V; kv axis REVERSED so
                # q_scr fills exactly the rows the causal mask needs.
                pl.BlockSpec((1, kv_block, d_in),
                             lambda b, kk: (b, num_kv - 1 - kk, 0)),
                pl.BlockSpec((d_in, 3 * d_pad), lambda b, kk: (0, 0)),
                pl.BlockSpec((1, 3 * d_pad), lambda b, kk: (0, 0)),
            ],
            out_specs=pl.BlockSpec((1, T, d_pad), lambda b, kk: (b, 0, 0)),
            scratch_shapes=[
                pltpu.VMEM((T, d_pad), mxu_dtype),    # pre-scaled Q (incremental)
                pltpu.VMEM((T, d_pad), jnp.float32),  # output accumulator
            ],
        ),
        compiler_params=pltpu.CompilerParams(
            dimension_semantics=("parallel", "arbitrary"),
            vmem_limit_bytes=vmem_limit,
        ),
    )(x_c, w_qkv, b_qkv)

    return out[..., :d_out] if d_pad != d_out else out


def _reference(x, params):
    """Pure-JAX reference of the exact PyTorch forward (softmax over dim=1)."""
    T = x.shape[1]
    q = x @ params["wq"].T + params["bq"]
    k = x @ params["wk"].T + params["bk"]
    v = x @ params["wv"].T + params["bv"]
    s = jnp.einsum("bqd,bkd->bqk", q, k)
    mask = jnp.triu(jnp.ones((T, T), bool), k=1)
    s = jnp.where(mask[None], -jnp.inf, s)
    p = jax.nn.softmax(s / (k.shape[-1] ** 0.5), axis=1)   # dim=1 == query axis
    return jnp.einsum("bqk,bkd->bqd", p, v)


if __name__ == "__main__":
    B, T = 2, 8              # batch, num_tokens (== context_length)
    d_in, d_out = 32, 32

    key = jax.random.PRNGKey(0)
    ks = jax.random.split(key, 7)
    init = lambda k, shape, fan_in: (
        jax.random.uniform(k, shape, jnp.float32, -1.0, 1.0) / math.sqrt(fan_in))
    params = {
        "wq": init(ks[0], (d_out, d_in), d_in), "bq": init(ks[1], (d_out,), d_in),
        "wk": init(ks[2], (d_out, d_in), d_in), "bk": init(ks[3], (d_out,), d_in),
        "wv": init(ks[4], (d_out, d_in), d_in), "bv": init(ks[5], (d_out,), d_in),
    }
    x = jax.random.normal(ks[6], (B, T, d_in), jnp.float32)

    out = causal_attention(x, params)            # bf16 MXU, f32 accumulation
    out = jax.block_until_ready(out)

    ref = _reference(x, params)
    assert out.shape == (B, T, d_out)
    max_err = float(jnp.max(jnp.abs(out - ref)))
    assert jnp.allclose(out, ref, atol=5e-2, rtol=5e-2), f"mismatch vs ref: {max_err}"
    print("KERNEL_OK")
</pallas_src>

<mosaic_0001>
module attributes {stable_mosaic.version = 11 : i64} {
  func.func @_causal_attn_kernel(%arg0: i32, %arg1: i32, %arg2: memref<1x8x32xbf16, #tpu.memory_space<vmem>>, %arg3: memref<32x384xbf16, #tpu.memory_space<vmem>>, %arg4: memref<1x384xf32, #tpu.memory_space<vmem>>, %arg5: memref<1x8x128xf32, #tpu.memory_space<vmem>>, %arg6: memref<8x128xbf16, #tpu.memory_space<vmem>>, %arg7: memref<8x128xf32, #tpu.memory_space<vmem>>) attributes {dimension_semantics = [#tpu.dimension_semantics<parallel>, #tpu.dimension_semantics<arbitrary>], iteration_bounds = array<i64: 2, 1>, scalar_prefetch = 0 : i64, scratch_operands = 2 : i64, tpu.core_type = #tpu.core_type<tc>, window_params = [{transform_indices = @transform_0, window_bounds = array<i64: 1, 8, 32>}, {pipeline_mode = #tpu.pipeline_mode<synchronous>, transform_indices = @transform_1, window_bounds = array<i64: 32, 384>}, {pipeline_mode = #tpu.pipeline_mode<synchronous>, transform_indices = @transform_2, window_bounds = array<i64: 1, 384>}, {transform_indices = @transform_3, window_bounds = array<i64: 1, 8, 128>}]} {
    %c0_i32 = arith.constant 0 : i32
    %0 = arith.subi %c0_i32, %arg1 : i32
    %c0_i32_0 = arith.constant 0 : i32
    %1 = arith.cmpi eq, %arg1, %c0_i32_0 : i32
    %2 = arith.extui %1 : i1 to i32
    %c0_i32_1 = arith.constant 0 : i32
    %3 = arith.cmpi ne, %2, %c0_i32_1 : i32
    scf.if %3 {
      %cst_24 = arith.constant 0.000000e+00 : f32
      %52 = vector.broadcast %cst_24 : f32 to vector<8x128xf32>
      %c0_25 = arith.constant 0 : index
      %c0_26 = arith.constant 0 : index
      %53 = vector.load %arg7[%c0_25, %c0_26] : memref<8x128xf32, #tpu.memory_space<vmem>>, vector<8x128xf32>
      tpu.vector_store %arg7[%c0_25, %c0_26], %52 {strides = array<i32>} : memref<8x128xf32, #tpu.memory_space<vmem>>, vector<8x128xf32>,
    } else {
    }
    %c0 = arith.constant 0 : index
    %c0_2 = arith.constant 0 : index
    %c0_3 = arith.constant 0 : index
    %4 = vector.load %arg2[%c0, %c0_2, %c0_3] : memref<1x8x32xbf16, #tpu.memory_space<vmem>>, vector<1x8x32xbf16>
    %5 = vector.shape_cast %4 : vector<1x8x32xbf16> to vector<8x32xbf16>
    %c0_4 = arith.constant 0 : index
    %c0_5 = arith.constant 0 : index
    %6 = vector.load %arg3[%c0_4, %c0_5] : memref<32x384xbf16, #tpu.memory_space<vmem>>, vector<32x384xbf16>
    %cst = arith.constant dense<0.000000e+00> : vector<8x384xf32>
    %7 = tpu.matmul %5, %6, %cst {dimension_numbers = #tpu.dot_dimension_numbers<[1], [0], [0], [1], [0, 0, 1, 1], [], []>} : vector<8x32xbf16>, vector<32x384xbf16>, vector<8x384xf32> -> vector<8x384xf32>
    %c0_6 = arith.constant 0 : index
    %c0_7 = arith.constant 0 : index
    %8 = vector.load %arg4[%c0_6, %c0_7] : memref<1x384xf32, #tpu.memory_space<vmem>>, vector<1x384xf32>
    %9 = vector.shape_cast %8 : vector<1x384xf32> to vector<384xf32>
    %10 = vector.shape_cast %9 : vector<384xf32> to vector<1x384xf32>
    %11 = vector.broadcast %10 : vector<1x384xf32> to vector<8x384xf32>
    %12 = arith.addf %7, %11 : vector<8x384xf32>
    %13 = vector.extract_strided_slice %12 {offsets = [0, 0], sizes = [8, 128], strides = [1, 1]} : vector<8x384xf32> to vector<8x128xf32>
    %14 = vector.extract_strided_slice %12 {offsets = [0, 128], sizes = [8, 128], strides = [1, 1]} : vector<8x384xf32> to vector<8x128xf32>
    %15 = vector.extract_strided_slice %12 {offsets = [0, 256], sizes = [8, 128], strides = [1, 1]} : vector<8x384xf32> to vector<8x128xf32>
    %cst_8 = arith.constant 0.176776692 : f32
    %16 = vector.broadcast %cst_8 : f32 to vector<8x128xf32>
    %17 = arith.mulf %13, %16 : vector<8x128xf32>
    %18 = arith.truncf %17 : vector<8x128xf32> to vector<8x128xbf16>
    %c0_9 = arith.constant 0 : index
    %c0_10 = arith.constant 0 : index
    %19 = vector.load %arg6[%c0_9, %c0_10] : memref<8x128xbf16, #tpu.memory_space<vmem>>, vector<8x128xbf16>
    tpu.vector_store %arg6[%c0_9, %c0_10], %18 {strides = array<i32>} : memref<8x128xbf16, #tpu.memory_space<vmem>>, vector<8x128xbf16>,
    %c0_11 = arith.constant 0 : index
    %c0_12 = arith.constant 0 : index
    %20 = vector.load %arg6[%c0_11, %c0_12] : memref<8x128xbf16, #tpu.memory_space<vmem>>, vector<8x128xbf16>
    %21 = arith.truncf %14 : vector<8x128xf32> to vector<8x128xbf16>
    %cst_13 = arith.constant dense<0.000000e+00> : vector<8x8xf32>
    %22 = tpu.matmul %20, %21, %cst_13 {dimension_numbers = #tpu.dot_dimension_numbers<[1], [1], [0], [0], [0, 0, 1, 0], [], []>} : vector<8x128xbf16>, vector<8x128xbf16>, vector<8x8xf32> -> vector<8x8xf32>
    %23 = tpu.iota {dimensions = array<i32: 0>} : vector<8x8xi32>
    %24 = tpu.iota {dimensions = array<i32: 1>} : vector<8x8xi32>
    %c8_i32 = arith.constant 8 : i32
    %25 = arith.muli %0, %c8_i32 : i32
    %26 = vector.broadcast %25 : i32 to vector<8x8xi32>
    %27 = arith.addi %24, %26 : vector<8x8xi32>
    %28 = arith.cmpi sgt, %27, %23 : vector<8x8xi32>
    %cst_14 = arith.constant 0xFF800000 : f32
    %29 = vector.broadcast %cst_14 : f32 to vector<8x8xf32>
    %30 = arith.select %28, %29, %22 : vector<8x8xi1>, vector<8x8xf32>
    %cst_15 = arith.constant dense<0xFF800000> : vector<8xf32>
    %31 = vector.multi_reduction <maximumf>, %30, %cst_15 [0] : vector<8x8xf32> to vector<8xf32>
    %32 = vector.shape_cast %31 : vector<8xf32> to vector<1x8xf32>
    %33 = vector.broadcast %32 : vector<1x8xf32> to vector<8x8xf32>
    %34 = arith.subf %30, %33 : vector<8x8xf32>
    %35 = arith.truncf %34 : vector<8x8xf32> to vector<8x8xbf16>
    %36 = math.exp %35 : vector<8x8xbf16>
    %37 = arith.extf %36 : vector<8x8xbf16> to vector<8x8xf32>
    %cst_16 = arith.constant dense<0.000000e+00> : vector<8xf32>
    %38 = vector.multi_reduction <add>, %37, %cst_16 [0] : vector<8x8xf32> to vector<8xf32>
    %39 = vector.shape_cast %38 : vector<8xf32> to vector<1x8xf32>
    %40 = tpu.reciprocal %39 {approx = true} : vector<1x8xf32> -> vector<1x8xf32>
    %41 = vector.shape_cast %40 : vector<1x8xf32> to vector<8x1xf32>
    %42 = vector.broadcast %41 : vector<8x1xf32> to vector<8x128xf32>
    %43 = arith.mulf %15, %42 : vector<8x128xf32>
    %44 = arith.truncf %43 : vector<8x128xf32> to vector<8x128xbf16>
    %c0_17 = arith.constant 0 : index
    %c0_18 = arith.constant 0 : index
    %45 = vector.load %arg7[%c0_17, %c0_18] : memref<8x128xf32, #tpu.memory_space<vmem>>, vector<8x128xf32>
    %cst_19 = arith.constant dense<0.000000e+00> : vector<8x128xf32>
    %46 = tpu.matmul %36, %44, %cst_19 {dimension_numbers = #tpu.dot_dimension_numbers<[1], [0], [0], [1], [0, 0, 1, 1], [], []>} : vector<8x8xbf16>, vector<8x128xbf16>, vector<8x128xf32> -> vector<8x128xf32>
    %47 = arith.addf %45, %46 : vector<8x128xf32>
    %c0_20 = arith.constant 0 : index
    %c0_21 = arith.constant 0 : index
    %48 = vector.load %arg7[%c0_20, %c0_21] : memref<8x128xf32, #tpu.memory_space<vmem>>, vector<8x128xf32>
    tpu.vector_store %arg7[%c0_20, %c0_21], %47 {strides = array<i32>} : memref<8x128xf32, #tpu.memory_space<vmem>>, vector<8x128xf32>,
    %c0_i32_22 = arith.constant 0 : i32
    %49 = arith.cmpi eq, %arg1, %c0_i32_22 : i32
    %50 = arith.extui %49 : i1 to i32
    %c0_i32_23 = arith.constant 0 : i32
    %51 = arith.cmpi ne, %50, %c0_i32_23 : i32
    scf.if %51 {
      %c0_24 = arith.constant 0 : index
      %c0_25 = arith.constant 0 : index
      %52 = vector.load %arg7[%c0_24, %c0_25] : memref<8x128xf32, #tpu.memory_space<vmem>>, vector<8x128xf32>
      %c0_26 = arith.constant 0 : index
      %c0_27 = arith.constant 0 : index
      %c0_28 = arith.constant 0 : index
      %53 = vector.load %arg5[%c0_26, %c0_27, %c0_28] : memref<1x8x128xf32, #tpu.memory_space<vmem>>, vector<1x8x128xf32>
      %54 = vector.shape_cast %53 : vector<1x8x128xf32> to vector<8x128xf32>
      %55 = vector.shape_cast %52 : vector<8x128xf32> to vector<1x8x128xf32>
      tpu.vector_store %arg5[%c0_26, %c0_27, %c0_28], %55 {strides = array<i32>} : memref<1x8x128xf32, #tpu.memory_space<vmem>>, vector<1x8x128xf32>,
    } else {
    }
    return
  }
  func.func @transform_0(%arg0: i32, %arg1: i32) -> (i32, i32, i32) {
    %c0_i32 = arith.constant 0 : i32
    %0 = arith.subi %c0_i32, %arg1 : i32
    %c0_i32_0 = arith.constant 0 : i32
    %c0_i32_1 = arith.constant 0 : i32
    return %arg0, %0, %c0_i32_0 : i32, i32, i32
  }
  func.func @transform_1(%arg0: i32, %arg1: i32) -> (i32, i32) {
    %c0_i32 = arith.constant 0 : i32
    %c0_i32_0 = arith.constant 0 : i32
    %c0_i32_1 = arith.constant 0 : i32
    return %c0_i32, %c0_i32_0 : i32, i32
  }
  func.func @transform_2(%arg0: i32, %arg1: i32) -> (i32, i32) {
    %c0_i32 = arith.constant 0 : i32
    %c0_i32_0 = arith.constant 0 : i32
    %c0_i32_1 = arith.constant 0 : i32
    return %c0_i32, %c0_i32_0 : i32, i32
  }
  func.func @transform_3(%arg0: i32, %arg1: i32) -> (i32, i32, i32) {
    %c0_i32 = arith.constant 0 : i32
    %c0_i32_0 = arith.constant 0 : i32
    %c0_i32_1 = arith.constant 0 : i32
    return %arg0, %c0_i32, %c0_i32_0 : i32, i32, i32
  }
}

</mosaic_0001>

<llo_original>
// kernel: tpu_custom_call.1
$region0: #{tpu_custom_call.1}
  #allocation0 [shape = 'u32[]', space=smem, size = 0x4, offset = 0x4, fixed_abs, tag = 'smem constant byte address 0x4 - core index']
  #allocation1 [shape = 'u32[144,128]{1,0:T(1,128)}', space=vmem, size = 0x12000, scoped, tag = 'internal scratch']
  #allocation2 [shape = 'bf16[8,128]{1,0:T(8,128)(2,1)}', space=vmem, size = 0x800, scoped, tag = 'scratch operand']
  #allocation3 [shape = 'f32[8,128]{1,0:T(8,128)}', space=vmem, size = 0x1000, scoped, tag = 'scratch operand']
  %s0 = inlined_call_operand.hbm [shape: bf16[2,8,32], index: 0, kind: input, shape index: {}]
  %s1 = inlined_call_operand.hbm [shape: bf16[32,384], index: 1, kind: input, shape index: {}]
  %s2 = inlined_call_operand.vmem [shape: f32[1,384], index: 2, kind: input, shape index: {}]
  %s3 = inlined_call_operand.hbm [shape: f32[2,8,128], index: 3, kind: output, shape index: {}]
  %s4 = sld [smem:[#allocation0]]
  $region61: #{tpu_custom_call.1} parent=0
    _
  %s6 = ssub.s32 1, %s4
  %s7 = scalar_select 0, %s6, %s4
  $region1: #{tpu_custom_call.1} parent=0
    #allocation4 [shape = 'u8[4096]{0}', space=vmem, size = 0x1000, scoped, tag = 'input window, operand 0']
    #allocation5 [shape = 's32[2]{0}', space=sflag, size = 0x8, scoped, tag = 'scoped memory for tpu_custom_call.1']
    #allocation6 [shape = 's32[2]{0}', space=sflag, size = 0x8, scoped, tag = 'scoped memory for tpu_custom_call.1']
    #allocation7 [shape = 'u8[24576]{0}', space=vmem, size = 0x6000, scoped, tag = 'input window, operand 1, single buffered']
    #allocation8 [shape = 's32[1]{0}', space=sflag, size = 0x4, scoped, tag = 'scoped memory for tpu_custom_call.1']
    #allocation9 [shape = 'u8[8192]{0}', space=vmem, size = 0x2000, scoped, tag = 'output window, operand 0']
    %8 = vsyncpa [#allocation5], 0
    %s9 = scalar_lea.sflag [#allocation5], 1
    %10 = vsyncpa %s9, 0
    %11 = vsyncpa [#allocation8], 0
    %12 = vsyncpa [#allocation6], 0
    %s13 = scalar_lea.sflag [#allocation6], 1
    %14 = vsyncpa %s13, 0
    loop: start=0, step=1, limit=4
    $region2: #{tpu_custom_call.1} parent=1 // loop_pre_header
      _
    $region3: #{tpu_custom_call.1} parent=1 // loop_header
      %s16 = sphi 0, %s20
      %p17 = scmp.ge.s32.totalorder %s16, 4
      %s23 = sphi 0, %s35
      %s24 = sphi 0, %s31
      %s25 = sphi 0, %s23
      %s26 = sphi 0, %s24
      %s27 = sphi 0, %s25
      %s28 = sphi 0, %s26
      %s42 = sphi 0, %s44
      %s45 = sphi 0, %s42
      %s46 = sphi 0, %s45
      %s62 = sphi 0, %s46
      %s66 = sphi 0, %s66
      %s68 = sphi 0, %s66
      %s69 = sphi 0, %s68
      %s83 = sphi 0, %s69
      %s87 = sphi 0, %s87
      %s89 = sphi 0, %s87
      %s90 = sphi 0, %s89
      %s104 = sphi 0, %s90
      %s110 = sphi 0, %s112
      %s113 = sphi 0, %s110
      %s114 = sphi 0, %s113
      %s130 = sphi 0, %s114
    $region4: #{tpu_custom_call.1} parent=1 // loop_header_branch
      %19 = sbr.rel (%p17) target = $region8
    $region5: #{tpu_custom_call.1} parent=1 // loop_body
      %s21 = ssub.s32 %s16, 1
      %s22 = ssub.s32 %s16, 2
      %s29 = sadd.s32 1, %s24
      %p30 = scmp.ge.s32.totalorder %s29, 1
      %s31 = scalar_select %p30, 0, %s29
      %s32 = sadd.s32 1, %s23
      %s33 = scalar_select %p30, %s32, %s23
      %p34 = scmp.ge.s32.totalorder %s33, 2
      %s35 = scalar_select %p34, 0, %s33
      %s36 = ssub.s32 0, %s24
      %s37 = ssub.s32 0, %s31
      %s38 = ssub.s32 %s23, %s35
      %s39 = ssub.s32 %s36, %s37
      %s40 = sor.u32 %s38, %s39
      %p41 = scmp.eq.s32.totalorder %s40, 0
      %s43 = sadd.s32 %s42, 1
      %s44 = scalar_select %p41, %s42, %s43
      %p47 = pneg %p41
      %p48 = scmp.eq.s32.totalorder %s16, 1
      %p49 = por %p47, %p48
      %p50 = scmp.ne.s32.totalorder %s42, %s45
      %p51 = scmp.eq.s32.totalorder %s16, 0
      %p52 = por %p50, %p51
      %p53 = scmp.ne.s32.totalorder %s42, %s45
      %p54 = scmp.eq.s32.totalorder %s21, 1
      %p55 = por %p53, %p54
      %p56 = scmp.ne.s32.totalorder %s45, %s46
      %p57 = scmp.eq.s32.totalorder %s21, 0
      %p58 = por %p56, %p57
      %p59 = scmp.ne.s32.totalorder %s45, %s46
      %p60 = scmp.eq.s32.totalorder %s22, 1
      %p61 = por %p59, %p60
      %p63 = scmp.ne.s32.totalorder %s46, %s62
      %p64 = scmp.eq.s32.totalorder %s22, 0
      %p65 = por %p63, %p64
      %s67 = sadd.s32 %s66, 1
      %p70 = scmp.eq.s32.totalorder %s16, 1
      %p71 = scmp.ne.s32.totalorder %s66, %s68
      %p72 = scmp.eq.s32.totalorder %s16, 0
      %p73 = por %p71, %p72
      %p74 = scmp.ne.s32.totalorder %s66, %s68
      %p75 = scmp.eq.s32.totalorder %s21, 1
      %p76 = por %p74, %p75
      %p77 = scmp.ne.s32.totalorder %s68, %s69
      %p78 = scmp.eq.s32.totalorder %s21, 0
      %p79 = por %p77, %p78
      %p80 = scmp.ne.s32.totalorder %s68, %s69
      %p81 = scmp.eq.s32.totalorder %s22, 1
      %p82 = por %p80, %p81
      %p84 = scmp.ne.s32.totalorder %s69, %s83
      %p85 = scmp.eq.s32.totalorder %s22, 0
      %p86 = por %p84, %p85
      %s88 = sadd.s32 %s87, 1
      %p91 = scmp.eq.s32.totalorder %s16, 1
      %p92 = scmp.ne.s32.totalorder %s87, %s89
      %p93 = scmp.eq.s32.totalorder %s16, 0
      %p94 = por %p92, %p93
      %p95 = scmp.ne.s32.totalorder %s87, %s89
      %p96 = scmp.eq.s32.totalorder %s21, 1
      %p97 = por %p95, %p96
      %p98 = scmp.ne.s32.totalorder %s89, %s90
      %p99 = scmp.eq.s32.totalorder %s21, 0
      %p100 = por %p98, %p99
      %p101 = scmp.ne.s32.totalorder %s89, %s90
      %p102 = scmp.eq.s32.totalorder %s22, 1
      %p103 = por %p101, %p102
      %p105 = scmp.ne.s32.totalorder %s90, %s104
      %p106 = scmp.eq.s32.totalorder %s22, 0
      %p107 = por %p105, %p106
      %s108 = ssub.s32 %s23, %s35
      %p109 = scmp.eq.s32.totalorder %s108, 0
      %s111 = sadd.s32 %s110, 1
      %s112 = scalar_select %p109, %s110, %s111
      %p115 = pneg %p109
      %p116 = scmp.eq.s32.totalorder %s16, 1
      %p117 = por %p115, %p116
      %p118 = scmp.ne.s32.totalorder %s110, %s113
      %p119 = scmp.eq.s32.totalorder %s16, 0
      %p120 = por %p118, %p119
      %p121 = scmp.ne.s32.totalorder %s110, %s113
      %p122 = scmp.eq.s32.totalorder %s21, 1
      %p123 = por %p121, %p122
      %p124 = scmp.ne.s32.totalorder %s113, %s114
      %p125 = scmp.eq.s32.totalorder %s21, 0
      %p126 = por %p124, %p125
      %p127 = scmp.ne.s32.totalorder %s113, %s114
      %p128 = scmp.eq.s32.totalorder %s22, 1
      %p129 = por %p127, %p128
      %p131 = scmp.ne.s32.totalorder %s114, %s130
      %p132 = scmp.eq.s32.totalorder %s22, 0
      %p133 = por %p131, %p132
      %p134 = scmp.le.s32.totalorder 1, %s16
      %p135 = scmp.lt.s32.totalorder %s16, 3
      %p136 = pnand %p134, %p135
      %p137 = pneg %p136
      // Predicated region
      $region9: #{tpu_custom_call.1} parent=5 // pred_check
        _
      $region10: #{tpu_custom_call.1} parent=5 // pred_check_branch
        %139 = sbr.rel (%p136) target = $region12
      $region11: #{tpu_custom_call.1} parent=5 // pred_region
        %s140 = ssub.s32 %s16, 1
        // Predicated region
        $region13: #{tpu_custom_call.1} parent=11 // pred_check
          %p141 = pneg %p79
        $region14: #{tpu_custom_call.1} parent=11 // pred_check_branch
          %143 = sbr.rel (%p141) target = $region16
        $region15: #{tpu_custom_call.1} parent=11 // pred_region
          %s145 = ssub.s32 768, 768
          %146 = vsyncadd [#allocation8], %s145
          %s147 = sshll.u32 [#allocation7], 4
          %s148 = int_to_ptr.vmem [resolvable:$true] %s147
          %153 = dma.hbm_to_vmem [thread:$0]  %s1, 768, %s148, [#allocation8], 192, 192, 12
        $region16: #{tpu_custom_call.1} parent=11 // pred_fallthru
          _
        // Predicated region
        $region17: #{tpu_custom_call.1} parent=11 // pred_check
          %p154 = pneg %p100
        $region18: #{tpu_custom_call.1} parent=11 // pred_check_branch
          %156 = sbr.rel (%p154) target = $region20
        $region19: #{tpu_custom_call.1} parent=11 // pred_region
          _
        $region20: #{tpu_custom_call.1} parent=11 // pred_fallthru
          _
      $region12: #{tpu_custom_call.1} parent=5 // pred_fallthru
        _
      %p157 = scmp.lt.s32.totalorder %s16, 2
      // Predicated region
      $region21: #{tpu_custom_call.1} parent=5 // pred_check
        %p158 = pneg %p157
      $region22: #{tpu_custom_call.1} parent=5 // pred_check_branch
        %160 = sbr.rel (%p158) target = $region24
      $region23: #{tpu_custom_call.1} parent=5 // pred_region
        // Predicated region
        $region25: #{tpu_custom_call.1} parent=23 // pred_check
          %p161 = pneg %p52
        $region26: #{tpu_custom_call.1} parent=23 // pred_check_branch
          %163 = sbr.rel (%p161) target = $region28
        $region27: #{tpu_custom_call.1} parent=23 // pred_region
          %s164 = sand.u32 %s42, 1
          %s165 = scalar_lea.sflag [#allocation5], %s164
          %s166 = sand.u32 %s42, 1
          %s167 = smul.addr %s166, 4
          %s168 = scalar_lea.vmem [#allocation4], %s167
          %s169 = ssub.s32 0, %s24
          %s171 = ssub.s32 64, 64
          %172 = vsyncadd %s165, %s171
          %s173 = sadd.s32 %s169, %s23
          %s174 = smul.addr %s173, 64
          %s175 = scalar_lea.hbm %s0, %s174
          %s177 = sshll.u32 %s168, 4
          %s178 = int_to_ptr.vmem [resolvable:$true] %s177
          %180 = dma.hbm_to_vmem [thread:$0]  %s175, 64, %s178, %s165
        $region28: #{tpu_custom_call.1} parent=23 // pred_fallthru
          _
      $region24: #{tpu_custom_call.1} parent=5 // pred_fallthru
        _
      %p181 = scmp.le.s32.totalorder 1, %s16
      %p182 = scmp.lt.s32.totalorder %s16, 3
      %p183 = pnand %p181, %p182
      %p184 = pneg %p183
      // Predicated region
      $region29: #{tpu_custom_call.1} parent=5 // pred_check
        _
      $region30: #{tpu_custom_call.1} parent=5 // pred_check_branch
        %186 = sbr.rel (%p183) target = $region32
      $region31: #{tpu_custom_call.1} parent=5 // pred_region
        %s187 = ssub.s32 %s16, 1
        %s188 = sand.u32 %s45, 1
        %s189 = scalar_lea.sflag [#allocation5], %s188
        %s190 = sand.u32 %s45, 1
        %s191 = smul.addr %s190, 4
        %s192 = scalar_lea.vmem [#allocation4], %s191
        // Predicated region
        $region33: #{tpu_custom_call.1} parent=31 // pred_check
          %p193 = pneg %p58
        $region34: #{tpu_custom_call.1} parent=31 // pred_check_branch
          %195 = sbr.rel (%p193) target = $region36
        $region35: #{tpu_custom_call.1} parent=31 // pred_region
          %196 = dma.done %s189, 64
        $region36: #{tpu_custom_call.1} parent=31 // pred_fallthru
          _
        // Predicated region
        $region37: #{tpu_custom_call.1} parent=31 // pred_check
          %p197 = pneg %p79
        $region38: #{tpu_custom_call.1} parent=31 // pred_check_branch
          %199 = sbr.rel (%p197) target = $region40
        $region39: #{tpu_custom_call.1} parent=31 // pred_region
          %200 = dma.done [#allocation8], 768
        $region40: #{tpu_custom_call.1} parent=31 // pred_fallthru
          _
        %s201 = sand.u32 %s45, 1
        %s202 = scalar_lea.sflag [#allocation5], %s201
        %s203 = sand.u32 %s45, 1
        %s204 = smul.addr %s203, 4
        %s205 = scalar_lea.vmem [#allocation4], %s204
        %p206 = pneg %p58
        %p207 = pneg %p55
        %p208 = pneg %p79
        %p209 = pneg %p76
        %p210 = pneg %p100
        %p211 = pneg %p97
        %p212 = pneg %p126
        %p213 = pneg %p123
        %s214 = sand.u32 %s113, 1
        %s215 = scalar_lea.sflag [#allocation6], %s214
        %s216 = sand.u32 %s113, 1
        %s217 = smul.addr %s216, 8
        %s218 = scalar_lea.vmem [#allocation9], %s217
        %s219 = ssub.s32 0, %s26
        %s221 = ssub.s32 0, %s26
        %p222 = scmp.eq.s32.totalorder %s26, 0
        // Predicated region
        $region41: #{tpu_custom_call.1} parent=31 // pred_check
          %p223 = pneg %p222
        $region42: #{tpu_custom_call.1} parent=31 // pred_check_branch
          %225 = sbr.rel (%p223) target = $region44
        $region43: #{tpu_custom_call.1} parent=31 // pred_region
          %226 = vst [vmem:[#allocation3] sm:$0xff] 0.0
        $region44: #{tpu_custom_call.1} parent=31 // pred_fallthru
          _
        %v227 = vld [vmem:[%s192] sm:$0xf]
        %v228 = vld [vmem:[#allocation7] sm:$0xff]
        %v229 = vld [vmem:[#allocation7 + $0x8] sm:$0xf]
        %v230 = vld [vmem:[#allocation7 + $0xc] sm:$0xff]
        %v231 = vld [vmem:[#allocation7 + $0x14] sm:$0xf]
        %v232 = vld [vmem:[#allocation7 + $0x18] sm:$0xff]
        %v233 = vld [vmem:[#allocation7 + $0x20] sm:$0xf]
        %v234 = vld [vmem:[#allocation7 + $0x24] sm:$0xff]
        %v235 = vld [vmem:[#allocation7 + $0x2c] sm:$0xf]
        %v236 = vld [vmem:[%s2] sm:$0x7]
        %v238 = vlaneseq
        %v239 = vshrl.u32 %v238, 7
        %v240 = vsub.s32 0, %v239
        %v241 = vrot.slane %v236, %v240
        %v242 = vlaneseq
        %v243 = vshrl.u32 %v242, 7
        %v244 = vsub.s32 1, %v243
        %v245 = vrot.slane %v236, %v244
        %v246 = vlaneseq
        %v247 = vshrl.u32 %v246, 7
        %v248 = vsub.s32 2, %v247
        %v249 = vrot.slane %v236, %v248
        %v261 = vunpack.c.l.b16 %v228
        %v262 = vunpack.c.h.b16 %v228
        %v263 = vunpack.c.l.b16 %v229
        %v264 = vunpack.c.l.b16 %v230
        %v265 = vunpack.c.h.b16 %v230
        %v266 = vunpack.c.l.b16 %v231
        %v267 = vunpack.c.l.b16 %v232
        %v268 = vunpack.c.h.b16 %v232
        %v269 = vunpack.c.l.b16 %v233
        %v270 = vunpack.c.l.b16 %v234
        %v271 = vunpack.c.h.b16 %v234
        %v272 = vunpack.c.l.b16 %v235
        %v273 = vpack.c.b16 %v264, %v261
        %v274 = vpack.c.b16 %v265, %v262
        %v275 = vpack.c.b16 %v266, %v263
        %v276 = vpack.c.b16 %v270, %v267
        %v277 = vpack.c.b16 %v271, %v268
        %v278 = vpack.c.b16 %v272, %v269
        %vm285 = vcmask 261120
        %v287 = vsel %vm285, %v227, 0
        %289 = vmatprep.subr.bf16.mxu0 %v274
        %290 = vmatpush1.bf16.msra.mxu0 %v273
        %291 = vmatprep.subr.bf16.mxu0 %v277
        %292 = vmatpush1.bf16.msra.mxu0 %v276
        %293 = vmatprep.subr.bf16.mxu0 0
        %294 = vmatpush1.bf16.msra.mxu0 0
        %295 = vmatprep.subr.bf16.mxu0 0
        %296 = vmatpush1.bf16.msra.mxu0 0
        %297 = vmatprep.subr.bf16.mxu0 0
        %298 = vmatpush1.bf16.msra.mxu0 0
        %299 = vmatprep.subr.bf16.mxu0 0
        %300 = vmatpush1.bf16.msra.mxu0 0
        %301 = vmatprep.subr.bf16.mxu0 0
        %302 = vmatpush1.bf16.msra.mxu0 0
        %303 = vmatprep.subr.bf16.mxu0 0
        %304 = vmatpush1.bf16.msra.mxu0 0
        %305 = vmatprep.subr.bf16.mxu0 0
        %306 = vmatpush1.bf16.msra.mxu0 0
        %307 = vmatprep.subr.bf16.mxu0 0
        %308 = vmatpush1.bf16.msra.mxu0 0
        %309 = vmatprep.subr.bf16.mxu0 0
        %310 = vmatpush1.bf16.msra.mxu0 0
        %311 = vmatprep.subr.bf16.mxu0 0
        %312 = vmatpush1.bf16.msra.mxu0 0
        %313 = vmatprep.subr.bf16.mxu0 0
        %314 = vmatpush1.bf16.msra.mxu0 0
        %315 = vmatprep.subr.bf16.mxu0 0
        %316 = vmatpush1.bf16.msra.mxu0 0
        %317 = vmatprep.subr.bf16.mxu0 0
        %318 = vmatpush1.bf16.msra.mxu0 0
        %319 = vmatprep.subr.bf16.mxu0 0
        %320 = vmatpush1.bf16.msra.mxu0 0
        %321 = vmatprep.mubr.bf16.mxu0 0
        %322 = vmatmul.mubr.bf16.gmra.mrb[0].mxu0 %v287
        %v323 = vpop.f32.mrb[0].mxu0
        %v324 = vadd.f32 %v241, %v323
        %v325 = vpop.f32.mrb[0].mxu0
        %v326 = vadd.f32 %v245, %v325
        %v327 = vpop.f32.mrb[0].mxu0
        %v328 = vpop.f32.mrb[0].mxu0
        %329 = vdwg.mxu0
        %330 = vmatprep.subr.bf16.mxu0 0
        %331 = vmatpush1.bf16.msra.mxu0 %v275
        %332 = vmatprep.subr.bf16.mxu0 0
        %333 = vmatpush1.bf16.msra.mxu0 %v278
        %334 = vmatprep.subr.bf16.mxu0 0
        %335 = vmatpush1.bf16.msra.mxu0 0
        %336 = vmatprep.subr.bf16.mxu0 0
        %337 = vmatpush1.bf16.msra.mxu0 0
        %338 = vmatprep.subr.bf16.mxu0 0
        %339 = vmatpush1.bf16.msra.mxu0 0
        %340 = vmatprep.subr.bf16.mxu0 0
        %341 = vmatpush1.bf16.msra.mxu0 0
        %342 = vmatprep.subr.bf16.mxu0 0
        %343 = vmatpush1.bf16.msra.mxu0 0
        %344 = vmatprep.subr.bf16.mxu0 0
        %345 = vmatpush1.bf16.msra.mxu0 0
        %346 = vmatprep.subr.bf16.mxu0 0
        %347 = vmatpush1.bf16.msra.mxu0 0
        %348 = vmatprep.subr.bf16.mxu0 0
        %349 = vmatpush1.bf16.msra.mxu0 0
        %350 = vmatprep.subr.bf16.mxu0 0
        %351 = vmatpush1.bf16.msra.mxu0 0
        %352 = vmatprep.subr.bf16.mxu0 0
        %353 = vmatpush1.bf16.msra.mxu0 0
        %354 = vmatprep.subr.bf16.mxu0 0
        %355 = vmatpush1.bf16.msra.mxu0 0
        %356 = vmatprep.subr.bf16.mxu0 0
        %357 = vmatpush1.bf16.msra.mxu0 0
        %358 = vmatprep.subr.bf16.mxu0 0
        %359 = vmatpush1.bf16.msra.mxu0 0
        %360 = vmatprep.subr.bf16.mxu0 0
        %361 = vmatpush1.bf16.msra.mxu0 0
        %362 = vmatprep.mubr.bf16.mxu0 0
        %363 = vmatmul.mubr.bf16.gmra.mrb[0].mxu0 %v287
        %v364 = vpop.f32.mrb[0].mxu0
        %v365 = vadd.f32 %v249, %v364
        %v366 = vpop.f32.mrb[0].mxu0
        %v367 = vpop.f32.mrb[0].mxu0
        %v368 = vpop.f32.mrb[0].mxu0
        %369 = vdwg.mxu0
        %v370 = vmul.f32 %v324, 0.17677669
        %v371 = vpack.c.bf16 %v370, %v370
        %372 = vst [vmem:[#allocation2] sm:$0xf] %v371
        %v373 = vld [vmem:[#allocation2] sm:$0xf]
        %v374 = vpack.c.bf16 %v326, %v326
        %375 = vmatprep.subr.bf16.mxu0 0
        %376 = vmatpush1.bf16.xpose.msra.mxu0 %v374
        %377 = vmatprep.subr.bf16.mxu0 0
        %378 = vmatpush1.bf16.xpose.msra.mxu0 0
        %379 = vmatprep.subr.bf16.mxu0 0
        %380 = vmatpush1.bf16.xpose.msra.mxu0 0
        %381 = vmatprep.subr.bf16.mxu0 0
        %382 = vmatpush1.bf16.xpose.msra.mxu0 0
        %383 = vmatprep.subr.bf16.mxu0 0
        %384 = vmatpush1.bf16.xpose.msra.mxu0 0
        %385 = vmatprep.subr.bf16.mxu0 0
        %386 = vmatpush1.bf16.xpose.msra.mxu0 0
        %387 = vmatprep.subr.bf16.mxu0 0
        %388 = vmatpush1.bf16.xpose.msra.mxu0 0
        %389 = vmatprep.subr.bf16.mxu0 0
        %390 = vmatpush1.bf16.xpose.msra.mxu0 0
        %391 = vmatprep.subr.bf16.mxu0 0
        %392 = vmatpush1.bf16.xpose.msra.mxu0 0
        %393 = vmatprep.subr.bf16.mxu0 0
        %394 = vmatpush1.bf16.xpose.msra.mxu0 0
        %395 = vmatprep.subr.bf16.mxu0 0
        %396 = vmatpush1.bf16.xpose.msra.mxu0 0
        %397 = vmatprep.subr.bf16.mxu0 0
        %398 = vmatpush1.bf16.xpose.msra.mxu0 0
        %399 = vmatprep.subr.bf16.mxu0 0
        %400 = vmatpush1.bf16.xpose.msra.mxu0 0
        %401 = vmatprep.subr.bf16.mxu0 0
        %402 = vmatpush1.bf16.xpose.msra.mxu0 0
        %403 = vmatprep.subr.bf16.mxu0 0
        %404 = vmatpush1.bf16.xpose.msra.mxu0 0
        %405 = vmatprep.subr.bf16.mxu0 0
        %406 = vmatpush1.bf16.xpose.msra.mxu0 0
        %407 = vmatprep.mubr.bf16.mxu0 0
        %408 = vmatmul.mubr.bf16.gmra.mrb[0].mxu0 %v373
        %v409 = vpop.f32.mrb[0].mxu0
        %v410 = vadd.f32 0.0, %v409
        %v411 = vpop.f32.mrb[0].mxu0
        %v412 = vpop.f32.mrb[0].mxu0
        %v413 = vpop.f32.mrb[0].mxu0
        %414 = vdwg.mxu0
        %v415 = vlaneseq
        %v416 = vshrl.u32 %v415, 7
        %v417 = vlaneseq
        %v418 = vand.u32 %v417, 127
        %s419 = smul.u32 %s221, 8
        %v420 = vstv %s419
        %v421 = vadd.s32 %v418, %v420
        %vm422 = vcmp.gt.s32.totalorder %v421, %v416
        %v423 = vsel %vm422, -inf, %v410
        %vm424 = vcmask 64512
        %v425 = vsel %vm424, %v423, -inf
        %v426 = vrot.slane %v425, 4
        %v427 = vmax.f32 %v425, %v426
        %v428 = vrot.slane %v427, 2
        %v429 = vmax.f32 %v427, %v428
        %v430 = vrot.slane %v429, 1
        %v431 = vmax.f32 %v429, %v430
        %v432 = vsub.f32 %v423, %v431
        %v433 = vpack.c.bf16 %v432, %v432
        %v435 = vmul.bf16 %v433, 1069105081
        %v436 = vpow.bf16.pop %v435
        %v437 = vunpack.c.l.bf16 %v436
        %v438 = vsel %vm424, %v437, 0.0
        %v439 = vrot.slane %v438, 4
        %v440 = vadd.f32 %v438, %v439
        %v441 = vrot.slane %v440, 2
        %v442 = vadd.f32 %v440, %v441
        %v443 = vrot.slane %v442, 1
        %v444 = vadd.f32 %v442, %v443
        %v445 = vrcp.pop %v444
        %447 = vbcast.lane.b32.xlu0 %v445, 256
        %v448 = vpop.permute.xlu0 %447
        %v449 = vmul.f32 %v365, %v448
        %v450 = vpack.c.bf16 %v449, %v449
        %v451 = vld [vmem:[#allocation3] sm:$0xff]
        %v453 = vsel %vm424, %v436, 0
        %vm455 = vcmask 1043456
        %v457 = vsel %vm455, %v450, 0
        %459 = vmatprep.subr.bf16.mxu0 0
        %460 = vmatpush1.bf16.msra.mxu0 %v457
        %461 = vmatprep.subr.bf16.mxu0 0
        %462 = vmatpush1.bf16.msra.mxu0 0
        %463 = vmatprep.subr.bf16.mxu0 0
        %464 = vmatpush1.bf16.msra.mxu0 0
        %465 = vmatprep.subr.bf16.mxu0 0
        %466 = vmatpush1.bf16.msra.mxu0 0
        %467 = vmatprep.subr.bf16.mxu0 0
        %468 = vmatpush1.bf16.msra.mxu0 0
        %469 = vmatprep.subr.bf16.mxu0 0
        %470 = vmatpush1.bf16.msra.mxu0 0
        %471 = vmatprep.subr.bf16.mxu0 0
        %472 = vmatpush1.bf16.msra.mxu0 0
        %473 = vmatprep.subr.bf16.mxu0 0
        %474 = vmatpush1.bf16.msra.mxu0 0
        %475 = vmatprep.subr.bf16.mxu0 0
        %476 = vmatpush1.bf16.msra.mxu0 0
        %477 = vmatprep.subr.bf16.mxu0 0
        %478 = vmatpush1.bf16.msra.mxu0 0
        %479 = vmatprep.subr.bf16.mxu0 0
        %480 = vmatpush1.bf16.msra.mxu0 0
        %481 = vmatprep.subr.bf16.mxu0 0
        %482 = vmatpush1.bf16.msra.mxu0 0
        %483 = vmatprep.subr.bf16.mxu0 0
        %484 = vmatpush1.bf16.msra.mxu0 0
        %485 = vmatprep.subr.bf16.mxu0 0
        %486 = vmatpush1.bf16.msra.mxu0 0
        %487 = vmatprep.subr.bf16.mxu0 0
        %488 = vmatpush1.bf16.msra.mxu0 0
        %489 = vmatprep.subr.bf16.mxu0 0
        %490 = vmatpush1.bf16.msra.mxu0 0
        %491 = vmatprep.mubr.bf16.mxu0 0
        %492 = vmatmul.mubr.bf16.gmra.mrb[0].mxu0 %v453
        %v493 = vpop.f32.mrb[0].mxu0
        %v494 = vadd.f32 0.0, %v493
        %v495 = vpop.f32.mrb[0].mxu0
        %v496 = vpop.f32.mrb[0].mxu0
        %v497 = vpop.f32.mrb[0].mxu0
        %498 = vdwg.mxu0
        %v499 = vadd.f32 %v451, %v494
        %500 = vst [vmem:[#allocation3] sm:$0xff] %v499
        // Predicated region
        $region45: #{tpu_custom_call.1} parent=31 // pred_check
          %p501 = pneg %p222
        $region46: #{tpu_custom_call.1} parent=31 // pred_check_branch
          %503 = sbr.rel (%p501) target = $region48
        $region47: #{tpu_custom_call.1} parent=31 // pred_region
          %v504 = vld [vmem:[#allocation3] sm:$0xff]
          %505 = vst [vmem:[%s218] sm:$0xff] %v504
        $region48: #{tpu_custom_call.1} parent=31 // pred_fallthru
          _
        %s506 = sand.u32 %s113, 1
        %s507 = scalar_lea.sflag [#allocation6], %s506
        %s508 = sand.u32 %s113, 1
        %s509 = smul.addr %s508, 8
        %s510 = scalar_lea.vmem [#allocation9], %s509
        // Predicated region
        $region49: #{tpu_custom_call.1} parent=31 // pred_check
          %p511 = pneg %p123
        $region50: #{tpu_custom_call.1} parent=31 // pred_check_branch
          %513 = sbr.rel (%p511) target = $region52
        $region51: #{tpu_custom_call.1} parent=31 // pred_region
          %s515 = ssub.s32 128, 128
          %516 = vsyncadd %s507, %s515
          %s517 = smul.addr %s25, 128
          %s518 = scalar_lea.hbm %s3, %s517
          %s520 = sshll.u32 %s510, 4
          %s521 = int_to_ptr.vmem [resolvable:$true] %s520
          %523 = dma.vmem_to_hbm [thread:$0]  %s521, 128, %s518, %s507
        $region52: #{tpu_custom_call.1} parent=31 // pred_fallthru
          _
      $region32: #{tpu_custom_call.1} parent=5 // pred_fallthru
        _
      %p524 = scmp.le.s32.totalorder 2, %s16
      // Predicated region
      $region53: #{tpu_custom_call.1} parent=5 // pred_check
        %p525 = pneg %p524
      $region54: #{tpu_custom_call.1} parent=5 // pred_check_branch
        %527 = sbr.rel (%p525) target = $region56
      $region55: #{tpu_custom_call.1} parent=5 // pred_region
        %s528 = ssub.s32 %s16, 2
        // Predicated region
        $region57: #{tpu_custom_call.1} parent=55 // pred_check
          %p529 = pneg %p129
        $region58: #{tpu_custom_call.1} parent=55 // pred_check_branch
          %531 = sbr.rel (%p529) target = $region60
        $region59: #{tpu_custom_call.1} parent=55 // pred_region
          %s532 = sand.u32 %s114, 1
          %s533 = scalar_lea.sflag [#allocation6], %s532
          %s534 = sand.u32 %s114, 1
          %s535 = smul.addr %s534, 8
          %s536 = scalar_lea.vmem [#allocation9], %s535
          %537 = dma.done %s533, 128
        $region60: #{tpu_custom_call.1} parent=55 // pred_fallthru
          _
      $region56: #{tpu_custom_call.1} parent=5 // pred_fallthru
        _
    $region6: #{tpu_custom_call.1} parent=1 // loop_footer
      %s20 = sadd.s32 1, %s16
    $region7: #{tpu_custom_call.1} parent=1 // loop_footer_branch
      %15 = sbr.rel target = $region3
    $region8: #{tpu_custom_call.1} parent=1 // loop_exit
      _
    %538 = vsyncpa [#allocation5], 1
    %s539 = scalar_lea.sflag [#allocation5], 1
    %540 = vsyncpa %s539, 1
    %541 = vsyncpa [#allocation8], 1
    %542 = vsyncpa [#allocation6], 1
    %s543 = scalar_lea.sflag [#allocation6], 1
    %544 = vsyncpa %s543, 1

</llo_original>
